<compile_context>
chip_gen: v5e
topology: v5e:2x2
jax: 0.10.0
libtpu: 0.0.40
codegen_flags: <defaults>
</compile_context>

<pallas_src>
import jax
import jax.numpy as jnp
from jax import lax
from jax.experimental import pallas as pl
from jax.experimental.pallas import tpu as pltpu

EPS = 1e-5
LANE = 128


def _deconv_gemm_kernel(x_ref, w_ref, b_ref, o_ref):
    # x_ref: (1, Cin, TS)   bf16 NCDHW activation slab (spatial flattened & tiled)
    # w_ref: (Cin, Npad)    bf16 folded (BN-scaled) deconv weight, columns (i,j,k,co)-major
    # b_ref: (1, Npad)      f32 folded bias (conv bias * scale + BN shift)
    # o_ref: (1, TS, Npad)  out_dtype output rows
    acc = lax.dot_general(                      # (TS, Npad) = x_blk^T @ W on the MXU
        x_ref[0], w_ref[...],
        dimension_numbers=(((0,), (0,)), ((), ())),
        preferred_element_type=jnp.float32)
    acc = acc + b_ref[...]                      # bias / BN shift (broadcast over rows)
    o_ref[0] = jnp.maximum(acc, 0.0).astype(o_ref.dtype)   # ReLU, narrow output stream


def upsampling_deconv_block_pallas(x, w_t, bias, stride, normalization="none",
                                   gamma=None, beta=None, rmean=None, rvar=None,
                                   out_dtype=jnp.bfloat16, channels_last_out=False,
                                   vmem_budget_bytes=12 * 1024 * 1024):
    """x: (B, Cin, W, H, D) f32 (NCDHW); w_t: (Cin, Cout, s, s, s) ConvTranspose3d weight;
    bias: (Cout,).  Returns (B, Cout, W*s, H*s, D*s) (or NDHWC if channels_last_out)."""
    B, Cin, W, H, D = x.shape
    s = int(stride)
    Cout = w_t.shape[1]
    Nout = Cout * s * s * s
    S = W * H * D

    # ---- fold BatchNorm (inference) into weight columns + bias ----
    if normalization == "batchnorm":
        inv_std = 1.0 / jnp.sqrt(rvar.astype(jnp.float32) + EPS)
        scale = gamma.astype(jnp.float32) * inv_std                  # (Cout,)
        shift = beta.astype(jnp.float32) - rmean.astype(jnp.float32) * scale
    elif normalization == "none":
        scale = jnp.ones((Cout,), jnp.float32)
        shift = jnp.zeros((Cout,), jnp.float32)
    else:
        raise NotImplementedError(normalization)  # TODO(synk): groupnorm / instancenorm

    # (i,j,k,co)-major columns keep Cout in the lane dim of the GEMM output, so the
    # post-kernel un-blocking never moves channels across lanes.
    w_folded = w_t.astype(jnp.float32) * scale[None, :, None, None, None]  # (Cin,Cout,s,s,s)
    w_mat = jnp.transpose(w_folded, (0, 2, 3, 4, 1)).reshape(Cin, Nout)    # (Cin, i*j*k*co)
    bias_eff = bias.astype(jnp.float32) * scale + shift                    # (Cout,)
    bias_col = jnp.tile(bias_eff, s * s * s)                               # (Nout,), ijk-major

    # ---- TPU-friendly padding: N -> next 128 multiple only (no fixed-512 rounding) ----
    out_bytes = jnp.dtype(out_dtype).itemsize
    Npad = ((Nout + LANE - 1) // LANE) * LANE
    # TODO(synk): for big v6e/v7x decoder stages, padding K=Cin to a 256 multiple would fill
    # the 2x256 MXU; skipped here since the kernel is HBM-bound.

    # ---- spatial tile: largest 128-multiple that fits a conservative VMEM budget ----
    def vmem_est(t):
        return (2 * t * Npad * out_bytes        # double-buffered output block
                + 2 * Cin * t * 2               # double-buffered x block (bf16)
                + 2 * Cin * Npad * 2            # resident weight (worst case 2 bufs)
                + 2 * Npad * 4)                 # resident bias
    s128 = ((S + LANE - 1) // LANE) * LANE
    ts = LANE
    for cand in (1024, 512, 256, 128):
        cand = min(cand, s128)
        if vmem_est(cand) <= vmem_budget_bytes:
            ts = cand
            break
    # keep >= 2 grid steps so v7x's two TensorCores both get work
    if B * ((s128 + ts - 1) // ts) < 2 and ts > LANE:
        ts = max(LANE, (ts // 2) // LANE * LANE)
    Spad = ((S + ts - 1) // ts) * ts

    # ---- activations: NO transpose, NO f32 padded copy; reshape + bf16 cast only ----
    x_bf = x.reshape(B, Cin, S).astype(jnp.bfloat16)
    if Spad != S:
        x_bf = jnp.pad(x_bf, ((0, 0), (0, 0), (0, Spad - S)))

    w_pad = jnp.zeros((Cin, Npad), jnp.bfloat16).at[:, :Nout].set(w_mat.astype(jnp.bfloat16))
    b_pad = jnp.zeros((1, Npad), jnp.float32).at[0, :Nout].set(bias_col)

    cost = pl.CostEstimate(
        flops=2 * B * Spad * Cin * Npad,
        transcendentals=0,
        bytes_accessed=B * Spad * Cin * 2 + Cin * Npad * 2 + B * Spad * Npad * out_bytes)

    out = pl.pallas_call(
        _deconv_gemm_kernel,
        out_shape=jax.ShapeDtypeStruct((B, Spad, Npad), out_dtype),
        grid_spec=pltpu.PrefetchScalarGridSpec(
            num_scalar_prefetch=0,
            grid=(B, Spad // ts),
            in_specs=[
                pl.BlockSpec((1, Cin, ts), lambda b, m: (b, 0, m)),   # NCDHW slab, K whole
                pl.BlockSpec((Cin, Npad), lambda b, m: (0, 0)),       # full-N resident weight
                pl.BlockSpec((1, Npad), lambda b, m: (0, 0)),         # resident bias
            ],
            out_specs=pl.BlockSpec((1, ts, Npad), lambda b, m: (b, m, 0)),
        ),
        compiler_params=pltpu.CompilerParams(
            dimension_semantics=("parallel", "parallel"),
            vmem_limit_bytes=int(min(max(vmem_est(ts) + (4 << 20), 16 << 20), 48 << 20)),
        ),
        cost_estimate=cost,
    )(x_bf, w_pad, b_pad)                                              # (B, Spad, Npad)

    # ---- un-block: padded rows/cols sliced away; Cout stays lane-minor throughout ----
    out = out[:, :S, :Nout].reshape(B, W, H, D, s, s, s, Cout)
    out = jnp.transpose(out, (0, 1, 4, 2, 5, 3, 6, 7))        # sublane-only permute
    out = out.reshape(B, W * s, H * s, D * s, Cout)           # NDHWC, lane-dense
    if channels_last_out:
        return out
    # NCDHW to match the PyTorch module exactly: one channel-moving pass, in out_dtype.
    return jnp.transpose(out, (0, 4, 1, 2, 3))


def upsampling_deconv_block_reference(x, w_t, bias, stride, normalization="none",
                                      gamma=None, beta=None, rmean=None, rvar=None):
    """Pure-JAX f32 reference: transposed conv via lhs-dilated conv (torch-equivalent)."""
    s = stride
    w_flip = w_t[:, :, ::-1, ::-1, ::-1]
    w_oi = jnp.transpose(w_flip, (1, 0, 2, 3, 4))             # (Cout, Cin, s, s, s)
    dn = jax.lax.conv_dimension_numbers(x.shape, w_oi.shape, ("NCDHW", "OIDHW", "NCDHW"))
    y = jax.lax.conv_general_dilated(
        x, w_oi, window_strides=(1, 1, 1),
        padding=[(s - 1, s - 1)] * 3,
        lhs_dilation=(s, s, s),
        dimension_numbers=dn)
    y = y + bias[None, :, None, None, None]
    if normalization == "batchnorm":
        inv_std = 1.0 / jnp.sqrt(rvar + EPS)
        y = (y - rmean[None, :, None, None, None]) * inv_std[None, :, None, None, None]
        y = y * gamma[None, :, None, None, None] + beta[None, :, None, None, None]
    return jnp.maximum(y, 0.0)


if __name__ == "__main__":
    # Small shapes consistent with the module: deconv kernel==stride==2.
    B, Cin, Cout = 2, 8, 16
    W, H, D = 8, 8, 8
    stride = 2

    key = jax.random.PRNGKey(0)
    kx, kw, kb, kg, kbe, km, kv = jax.random.split(key, 7)

    x = jax.random.normal(kx, (B, Cin, W, H, D), dtype=jnp.float32)
    w_t = jax.random.normal(kw, (Cin, Cout, stride, stride, stride), dtype=jnp.float32) * 0.1
    bias = jax.random.normal(kb, (Cout,), dtype=jnp.float32) * 0.1
    gamma = jax.random.uniform(kg, (Cout,), dtype=jnp.float32, minval=0.5, maxval=1.5)
    beta = jax.random.normal(kbe, (Cout,), dtype=jnp.float32) * 0.1
    rmean = jax.random.normal(km, (Cout,), dtype=jnp.float32) * 0.1
    rvar = jax.random.uniform(kv, (Cout,), dtype=jnp.float32, minval=0.5, maxval=1.5)

    # --- normalization='none' (module default), channels-last fast path ---
    out_cl = upsampling_deconv_block_pallas(x, w_t, bias, stride, "none",
                                            channels_last_out=True)
    out_cl = jax.block_until_ready(out_cl)
    ref_none = jax.block_until_ready(
        upsampling_deconv_block_reference(x, w_t, bias, stride, "none"))
    ref_cl = jnp.transpose(ref_none, (0, 2, 3, 4, 1))
    assert out_cl.shape == (B, W * stride, H * stride, D * stride, Cout), out_cl.shape
    assert jnp.allclose(out_cl.astype(jnp.float32), ref_cl, rtol=2e-2, atol=2e-2), \
        float(jnp.max(jnp.abs(out_cl.astype(jnp.float32) - ref_cl)))

    # --- normalization='batchnorm' (as used in the pancreas network), NCDHW parity path ---
    out_bn = upsampling_deconv_block_pallas(
        x, w_t, bias, stride, "batchnorm", gamma, beta, rmean, rvar)
    out_bn = jax.block_until_ready(out_bn)
    ref_bn = jax.block_until_ready(
        upsampling_deconv_block_reference(
            x, w_t, bias, stride, "batchnorm", gamma, beta, rmean, rvar))
    assert out_bn.shape == (B, Cout, W * stride, H * stride, D * stride), out_bn.shape
    assert jnp.allclose(out_bn.astype(jnp.float32), ref_bn, rtol=2e-2, atol=2e-2), \
        float(jnp.max(jnp.abs(out_bn.astype(jnp.float32) - ref_bn)))

    print("KERNEL_OK")
</pallas_src>

<mosaic_0001>
module attributes {stable_mosaic.version = 11 : i64} {
  func.func @_deconv_gemm_kernel(%arg0: i32, %arg1: i32, %arg2: memref<1x8x512xbf16, #tpu.memory_space<vmem>>, %arg3: memref<8x128xbf16, #tpu.memory_space<vmem>>, %arg4: memref<1x128xf32, #tpu.memory_space<vmem>>, %arg5: memref<1x512x128xbf16, #tpu.memory_space<vmem>>) attributes {dimension_semantics = [#tpu.dimension_semantics<parallel>, #tpu.dimension_semantics<parallel>], iteration_bounds = array<i64: 2, 1>, scalar_prefetch = 0 : i64, scratch_operands = 0 : i64, tpu.core_type = #tpu.core_type<tc>, window_params = [{transform_indices = @transform_0, window_bounds = array<i64: 1, 8, 512>}, {pipeline_mode = #tpu.pipeline_mode<synchronous>, transform_indices = @transform_1, window_bounds = array<i64: 8, 128>}, {pipeline_mode = #tpu.pipeline_mode<synchronous>, transform_indices = @transform_2, window_bounds = array<i64: 1, 128>}, {transform_indices = @transform_3, window_bounds = array<i64: 1, 512, 128>}]} {
    %c0 = arith.constant 0 : index
    %c0_0 = arith.constant 0 : index
    %c0_1 = arith.constant 0 : index
    %0 = vector.load %arg2[%c0, %c0_0, %c0_1] : memref<1x8x512xbf16, #tpu.memory_space<vmem>>, vector<1x8x512xbf16>
    %1 = vector.shape_cast %0 : vector<1x8x512xbf16> to vector<8x512xbf16>
    %c0_2 = arith.constant 0 : index
    %c0_3 = arith.constant 0 : index
    %2 = vector.load %arg3[%c0_2, %c0_3] : memref<8x128xbf16, #tpu.memory_space<vmem>>, vector<8x128xbf16>
    %cst = arith.constant dense<0.000000e+00> : vector<512x128xf32>
    %3 = tpu.matmul %1, %2, %cst {dimension_numbers = #tpu.dot_dimension_numbers<[0], [0], [1], [1], [0, 1, 1, 1], [], []>} : vector<8x512xbf16>, vector<8x128xbf16>, vector<512x128xf32> -> vector<512x128xf32>
    %c0_4 = arith.constant 0 : index
    %c0_5 = arith.constant 0 : index
    %4 = vector.load %arg4[%c0_4, %c0_5] : memref<1x128xf32, #tpu.memory_space<vmem>>, vector<1x128xf32>
    %5 = vector.broadcast %4 : vector<1x128xf32> to vector<512x128xf32>
    %6 = arith.addf %3, %5 : vector<512x128xf32>
    %cst_6 = arith.constant 0.000000e+00 : f32
    %7 = vector.broadcast %cst_6 : f32 to vector<512x128xf32>
    %8 = arith.maximumf %6, %7 : vector<512x128xf32>
    %9 = arith.truncf %8 : vector<512x128xf32> to vector<512x128xbf16>
    %c0_7 = arith.constant 0 : index
    %c0_8 = arith.constant 0 : index
    %c0_9 = arith.constant 0 : index
    %10 = vector.load %arg5[%c0_7, %c0_8, %c0_9] : memref<1x512x128xbf16, #tpu.memory_space<vmem>>, vector<1x512x128xbf16>
    %11 = vector.shape_cast %10 : vector<1x512x128xbf16> to vector<512x128xbf16>
    %12 = vector.shape_cast %9 : vector<512x128xbf16> to vector<1x512x128xbf16>
    tpu.vector_store %arg5[%c0_7, %c0_8, %c0_9], %12 {strides = array<i32>} : memref<1x512x128xbf16, #tpu.memory_space<vmem>>, vector<1x512x128xbf16>,
    return
  }
  func.func @transform_0(%arg0: i32, %arg1: i32) -> (i32, i32, i32) {
    %c0_i32 = arith.constant 0 : i32
    %c0_i32_0 = arith.constant 0 : i32
    return %arg0, %c0_i32, %arg1 : i32, i32, i32
  }
  func.func @transform_1(%arg0: i32, %arg1: i32) -> (i32, i32) {
    %c0_i32 = arith.constant 0 : i32
    %c0_i32_0 = arith.constant 0 : i32
    %c0_i32_1 = arith.constant 0 : i32
    return %c0_i32, %c0_i32_0 : i32, i32
  }
  func.func @transform_2(%arg0: i32, %arg1: i32) -> (i32, i32) {
    %c0_i32 = arith.constant 0 : i32
    %c0_i32_0 = arith.constant 0 : i32
    %c0_i32_1 = arith.constant 0 : i32
    return %c0_i32, %c0_i32_0 : i32, i32
  }
  func.func @transform_3(%arg0: i32, %arg1: i32) -> (i32, i32, i32) {
    %c0_i32 = arith.constant 0 : i32
    %c0_i32_0 = arith.constant 0 : i32
    return %arg0, %arg1, %c0_i32 : i32, i32, i32
  }
}

</mosaic_0001>

<llo_original>
// kernel: tpu_custom_call.1
$region0: #{tpu_custom_call.1}
  #allocation0 [shape = 'u32[]', space=smem, size = 0x4, offset = 0x4, fixed_abs, tag = 'smem constant byte address 0x4 - core index']
  #allocation1 [shape = 'u32[72,128]{1,0:T(1,128)}', space=vmem, size = 0x9000, scoped, tag = 'internal scratch']
  %s0 = inlined_call_operand.hbm [shape: bf16[2,8,512], index: 0, kind: input, shape index: {}]
  %s1 = inlined_call_operand.hbm [shape: bf16[8,128], index: 1, kind: input, shape index: {}]
  %s2 = inlined_call_operand.vmem [shape: f32[1,128], index: 2, kind: input, shape index: {}]
  %s3 = inlined_call_operand.hbm [shape: bf16[2,512,128], index: 3, kind: output, shape index: {}]
  %s4 = sld [smem:[#allocation0]]
  $region53: #{tpu_custom_call.1} parent=0
    _
  %s6 = ssub.s32 1, %s4
  %s7 = scalar_select 0, %s6, %s4
  $region1: #{tpu_custom_call.1} parent=0
    #allocation2 [shape = 'u8[16384]{0}', space=vmem, size = 0x4000, scoped, tag = 'input window, operand 0']
    #allocation3 [shape = 's32[2]{0}', space=sflag, size = 0x8, scoped, tag = 'scoped memory for tpu_custom_call.1']
    #allocation4 [shape = 's32[2]{0}', space=sflag, size = 0x8, scoped, tag = 'scoped memory for tpu_custom_call.1']
    #allocation5 [shape = 'u8[2048]{0}', space=vmem, size = 0x800, scoped, tag = 'input window, operand 1, single buffered']
    #allocation6 [shape = 's32[1]{0}', space=sflag, size = 0x4, scoped, tag = 'scoped memory for tpu_custom_call.1']
    #allocation7 [shape = 'u8[262144]{0}', space=vmem, size = 0x40000, scoped, tag = 'output window, operand 0']
    %8 = vsyncpa [#allocation3], 0
    %s9 = scalar_lea.sflag [#allocation3], 1
    %10 = vsyncpa %s9, 0
    %11 = vsyncpa [#allocation6], 0
    %12 = vsyncpa [#allocation4], 0
    %s13 = scalar_lea.sflag [#allocation4], 1
    %14 = vsyncpa %s13, 0
    loop: start=0, step=1, limit=4
    $region2: #{tpu_custom_call.1} parent=1 // loop_pre_header
      _
    $region3: #{tpu_custom_call.1} parent=1 // loop_header
      %s16 = sphi 0, %s20
      %p17 = scmp.ge.s32.totalorder %s16, 4
      %s23 = sphi 0, %s35
      %s24 = sphi 0, %s31
      %s25 = sphi 0, %s23
      %s26 = sphi 0, %s24
      %s27 = sphi 0, %s25
      %s28 = sphi 0, %s26
      %s40 = sphi 0, %s42
      %s43 = sphi 0, %s40
      %s44 = sphi 0, %s43
      %s60 = sphi 0, %s44
      %s64 = sphi 0, %s64
      %s66 = sphi 0, %s64
      %s67 = sphi 0, %s66
      %s81 = sphi 0, %s67
      %s85 = sphi 0, %s85
      %s87 = sphi 0, %s85
      %s88 = sphi 0, %s87
      %s102 = sphi 0, %s88
      %s110 = sphi 0, %s112
      %s113 = sphi 0, %s110
      %s114 = sphi 0, %s113
      %s130 = sphi 0, %s114
    $region4: #{tpu_custom_call.1} parent=1 // loop_header_branch
      %19 = sbr.rel (%p17) target = $region8
    $region5: #{tpu_custom_call.1} parent=1 // loop_body
      %s21 = ssub.s32 %s16, 1
      %s22 = ssub.s32 %s16, 2
      %s29 = sadd.s32 1, %s24
      %p30 = scmp.ge.s32.totalorder %s29, 1
      %s31 = scalar_select %p30, 0, %s29
      %s32 = sadd.s32 1, %s23
      %s33 = scalar_select %p30, %s32, %s23
      %p34 = scmp.ge.s32.totalorder %s33, 2
      %s35 = scalar_select %p34, 0, %s33
      %s36 = ssub.s32 %s23, %s35
      %s37 = ssub.s32 %s24, %s31
      %s38 = sor.u32 %s36, %s37
      %p39 = scmp.eq.s32.totalorder %s38, 0
      %s41 = sadd.s32 %s40, 1
      %s42 = scalar_select %p39, %s40, %s41
      %p45 = pneg %p39
      %p46 = scmp.eq.s32.totalorder %s16, 1
      %p47 = por %p45, %p46
      %p48 = scmp.ne.s32.totalorder %s40, %s43
      %p49 = scmp.eq.s32.totalorder %s16, 0
      %p50 = por %p48, %p49
      %p51 = scmp.ne.s32.totalorder %s40, %s43
      %p52 = scmp.eq.s32.totalorder %s21, 1
      %p53 = por %p51, %p52
      %p54 = scmp.ne.s32.totalorder %s43, %s44
      %p55 = scmp.eq.s32.totalorder %s21, 0
      %p56 = por %p54, %p55
      %p57 = scmp.ne.s32.totalorder %s43, %s44
      %p58 = scmp.eq.s32.totalorder %s22, 1
      %p59 = por %p57, %p58
      %p61 = scmp.ne.s32.totalorder %s44, %s60
      %p62 = scmp.eq.s32.totalorder %s22, 0
      %p63 = por %p61, %p62
      %s65 = sadd.s32 %s64, 1
      %p68 = scmp.eq.s32.totalorder %s16, 1
      %p69 = scmp.ne.s32.totalorder %s64, %s66
      %p70 = scmp.eq.s32.totalorder %s16, 0
      %p71 = por %p69, %p70
      %p72 = scmp.ne.s32.totalorder %s64, %s66
      %p73 = scmp.eq.s32.totalorder %s21, 1
      %p74 = por %p72, %p73
      %p75 = scmp.ne.s32.totalorder %s66, %s67
      %p76 = scmp.eq.s32.totalorder %s21, 0
      %p77 = por %p75, %p76
      %p78 = scmp.ne.s32.totalorder %s66, %s67
      %p79 = scmp.eq.s32.totalorder %s22, 1
      %p80 = por %p78, %p79
      %p82 = scmp.ne.s32.totalorder %s67, %s81
      %p83 = scmp.eq.s32.totalorder %s22, 0
      %p84 = por %p82, %p83
      %s86 = sadd.s32 %s85, 1
      %p89 = scmp.eq.s32.totalorder %s16, 1
      %p90 = scmp.ne.s32.totalorder %s85, %s87
      %p91 = scmp.eq.s32.totalorder %s16, 0
      %p92 = por %p90, %p91
      %p93 = scmp.ne.s32.totalorder %s85, %s87
      %p94 = scmp.eq.s32.totalorder %s21, 1
      %p95 = por %p93, %p94
      %p96 = scmp.ne.s32.totalorder %s87, %s88
      %p97 = scmp.eq.s32.totalorder %s21, 0
      %p98 = por %p96, %p97
      %p99 = scmp.ne.s32.totalorder %s87, %s88
      %p100 = scmp.eq.s32.totalorder %s22, 1
      %p101 = por %p99, %p100
      %p103 = scmp.ne.s32.totalorder %s88, %s102
      %p104 = scmp.eq.s32.totalorder %s22, 0
      %p105 = por %p103, %p104
      %s106 = ssub.s32 %s23, %s35
      %s107 = ssub.s32 %s24, %s31
      %s108 = sor.u32 %s106, %s107
      %p109 = scmp.eq.s32.totalorder %s108, 0
      %s111 = sadd.s32 %s110, 1
      %s112 = scalar_select %p109, %s110, %s111
      %p115 = pneg %p109
      %p116 = scmp.eq.s32.totalorder %s16, 1
      %p117 = por %p115, %p116
      %p118 = scmp.ne.s32.totalorder %s110, %s113
      %p119 = scmp.eq.s32.totalorder %s16, 0
      %p120 = por %p118, %p119
      %p121 = scmp.ne.s32.totalorder %s110, %s113
      %p122 = scmp.eq.s32.totalorder %s21, 1
      %p123 = por %p121, %p122
      %p124 = scmp.ne.s32.totalorder %s113, %s114
      %p125 = scmp.eq.s32.totalorder %s21, 0
      %p126 = por %p124, %p125
      %p127 = scmp.ne.s32.totalorder %s113, %s114
      %p128 = scmp.eq.s32.totalorder %s22, 1
      %p129 = por %p127, %p128
      %p131 = scmp.ne.s32.totalorder %s114, %s130
      %p132 = scmp.eq.s32.totalorder %s22, 0
      %p133 = por %p131, %p132
      %p134 = scmp.le.s32.totalorder 1, %s16
      %p135 = scmp.lt.s32.totalorder %s16, 3
      %p136 = pnand %p134, %p135
      %p137 = pneg %p136
      // Predicated region
      $region9: #{tpu_custom_call.1} parent=5 // pred_check
        _
      $region10: #{tpu_custom_call.1} parent=5 // pred_check_branch
        %139 = sbr.rel (%p136) target = $region12
      $region11: #{tpu_custom_call.1} parent=5 // pred_region
        %s140 = ssub.s32 %s16, 1
        // Predicated region
        $region13: #{tpu_custom_call.1} parent=11 // pred_check
          %p141 = pneg %p77
        $region14: #{tpu_custom_call.1} parent=11 // pred_check_branch
          %143 = sbr.rel (%p141) target = $region16
        $region15: #{tpu_custom_call.1} parent=11 // pred_region
          %145 = vsyncadd [#allocation6], 0
          %s147 = sshll.u32 %s1, 4
          %s148 = int_to_ptr.hbm [resolvable:$true] %s147
          %s149 = sshll.u32 [#allocation5], 4
          %s150 = int_to_ptr.vmem [resolvable:$true] %s149
          %152 = dma.hbm_to_vmem [thread:$0]  %s148, 64, %s150, [#allocation6]
        $region16: #{tpu_custom_call.1} parent=11 // pred_fallthru
          _
        // Predicated region
        $region17: #{tpu_custom_call.1} parent=11 // pred_check
          %p153 = pneg %p98
        $region18: #{tpu_custom_call.1} parent=11 // pred_check_branch
          %155 = sbr.rel (%p153) target = $region20
        $region19: #{tpu_custom_call.1} parent=11 // pred_region
          _
        $region20: #{tpu_custom_call.1} parent=11 // pred_fallthru
          _
      $region12: #{tpu_custom_call.1} parent=5 // pred_fallthru
        _
      %p156 = scmp.lt.s32.totalorder %s16, 2
      // Predicated region
      $region21: #{tpu_custom_call.1} parent=5 // pred_check
        %p157 = pneg %p156
      $region22: #{tpu_custom_call.1} parent=5 // pred_check_branch
        %159 = sbr.rel (%p157) target = $region24
      $region23: #{tpu_custom_call.1} parent=5 // pred_region
        // Predicated region
        $region25: #{tpu_custom_call.1} parent=23 // pred_check
          %p160 = pneg %p50
        $region26: #{tpu_custom_call.1} parent=23 // pred_check_branch
          %162 = sbr.rel (%p160) target = $region28
        $region27: #{tpu_custom_call.1} parent=23 // pred_region
          %s163 = sand.u32 %s40, 1
          %s164 = scalar_lea.sflag [#allocation3], %s163
          %s165 = sand.u32 %s40, 1
          %s166 = smul.addr %s165, 16
          %s167 = scalar_lea.vmem [#allocation2], %s166
          %s168 = smul.u32 4, %s24
          %170 = vsyncadd %s164, 0
          %s171 = smul.addr %s23, 4
          %s172 = sadd.s32 %s168, %s171
          %s173 = smul.addr %s172, 4
          %s174 = scalar_lea.hbm %s0, %s173
          %s176 = sshll.u32 %s174, 4
          %s177 = int_to_ptr.hbm [resolvable:$true] %s176
          %s178 = sshll.u32 %s167, 4
          %s179 = int_to_ptr.vmem [resolvable:$true] %s178
          %181 = dma.hbm_to_vmem [thread:$0]  %s177, 256, %s179, %s164
        $region28: #{tpu_custom_call.1} parent=23 // pred_fallthru
          _
      $region24: #{tpu_custom_call.1} parent=5 // pred_fallthru
        _
      %p182 = scmp.le.s32.totalorder 1, %s16
      %p183 = scmp.lt.s32.totalorder %s16, 3
      %p184 = pnand %p182, %p183
      %p185 = pneg %p184
      // Predicated region
      $region29: #{tpu_custom_call.1} parent=5 // pred_check
        _
      $region30: #{tpu_custom_call.1} parent=5 // pred_check_branch
        %187 = sbr.rel (%p184) target = $region32
      $region31: #{tpu_custom_call.1} parent=5 // pred_region
        %s188 = ssub.s32 %s16, 1
        %s189 = sand.u32 %s43, 1
        %s190 = scalar_lea.sflag [#allocation3], %s189
        %s191 = sand.u32 %s43, 1
        %s192 = smul.addr %s191, 16
        %s193 = scalar_lea.vmem [#allocation2], %s192
        // Predicated region
        $region33: #{tpu_custom_call.1} parent=31 // pred_check
          %p194 = pneg %p56
        $region34: #{tpu_custom_call.1} parent=31 // pred_check_branch
          %196 = sbr.rel (%p194) target = $region36
        $region35: #{tpu_custom_call.1} parent=31 // pred_region
          %198 = dma.done %s190, 256
        $region36: #{tpu_custom_call.1} parent=31 // pred_fallthru
          _
        // Predicated region
        $region37: #{tpu_custom_call.1} parent=31 // pred_check
          %p199 = pneg %p77
        $region38: #{tpu_custom_call.1} parent=31 // pred_check_branch
          %201 = sbr.rel (%p199) target = $region40
        $region39: #{tpu_custom_call.1} parent=31 // pred_region
          %203 = dma.done [#allocation6], 64
        $region40: #{tpu_custom_call.1} parent=31 // pred_fallthru
          _
        %s204 = sand.u32 %s43, 1
        %s205 = scalar_lea.sflag [#allocation3], %s204
        %s206 = sand.u32 %s43, 1
        %s207 = smul.addr %s206, 16
        %s208 = scalar_lea.vmem [#allocation2], %s207
        %p209 = pneg %p56
        %p210 = pneg %p53
        %p211 = pneg %p77
        %p212 = pneg %p74
        %p213 = pneg %p98
        %p214 = pneg %p95
        %p215 = pneg %p126
        %p216 = pneg %p123
        %s217 = sand.u32 %s113, 1
        %s218 = scalar_lea.sflag [#allocation4], %s217
        %s219 = sand.u32 %s113, 1
        %s220 = smul.addr %s219, 256
        %s221 = scalar_lea.vmem [#allocation7], %s220
        %s222 = smul.u32 4, %s26
        %s223 = smul.u32 64, %s26
        %v225 = vld [vmem:[%s193] sm:$0xff]
        %v226 = vld [vmem:[%s193 + $0x8] sm:$0xff]
        %v227 = vld [vmem:[#allocation5] sm:$0xf]
        %v228 = vld [vmem:[%s2] sm:$0x1]
        %v230 = vperm.slane %v228, 0
        %v234 = vunpack.c.l.b16 %v225
        %v235 = vunpack.c.h.b16 %v225
        %v236 = vunpack.c.l.b16 %v226
        %v237 = vunpack.c.h.b16 %v226
        %v238 = vpack.c.b16 %v234, %v234
        %v239 = vpack.c.b16 %v235, %v235
        %v240 = vpack.c.b16 %v236, %v236
        %v241 = vpack.c.b16 %v237, %v237
        %246 = vxpose.binary.xlu0.c.b16.start [1/16] %v239, %v238, 128
        %247 = vxpose.binary.xlu0.c.b16.cont [2/16] 0, 0, 128
        %248 = vxpose.binary.xlu0.c.b16.cont [3/16] 0, 0, 128
        %249 = vxpose.binary.xlu0.c.b16.cont [4/16] 0, 0, 128
        %250 = vxpose.binary.xlu0.c.b16.cont [5/16] 0, 0, 128
        %251 = vxpose.binary.xlu0.c.b16.cont [6/16] 0, 0, 128
        %252 = vxpose.binary.xlu0.c.b16.cont [7/16] 0, 0, 128
        %253 = vxpose.binary.xlu0.c.b16.end [8/16] 0, 0, 128
        %v254 = vpop.trf.xlu0
        %v255 = vpop.trf.xlu0
        %v256 = vpop.trf.xlu0
        %v257 = vpop.trf.xlu0
        %v258 = vpop.trf.xlu0
        %v259 = vpop.trf.xlu0
        %v260 = vpop.trf.xlu0
        %v261 = vpop.trf.xlu0
        %v262 = vpop.trf.xlu0
        %v263 = vpop.trf.xlu0
        %v264 = vpop.trf.xlu0
        %v265 = vpop.trf.xlu0
        %v266 = vpop.trf.xlu0
        %v267 = vpop.trf.xlu0
        %v268 = vpop.trf.xlu0
        %v269 = vpop.trf.xlu0
        %270 = vxpose.binary.xlu0.c.b16.start [1/16] %v241, %v240, 128
        %271 = vxpose.binary.xlu0.c.b16.cont [2/16] 0, 0, 128
        %272 = vxpose.binary.xlu0.c.b16.cont [3/16] 0, 0, 128
        %273 = vxpose.binary.xlu0.c.b16.cont [4/16] 0, 0, 128
        %274 = vxpose.binary.xlu0.c.b16.cont [5/16] 0, 0, 128
        %275 = vxpose.binary.xlu0.c.b16.cont [6/16] 0, 0, 128
        %276 = vxpose.binary.xlu0.c.b16.cont [7/16] 0, 0, 128
        %277 = vxpose.binary.xlu0.c.b16.end [8/16] 0, 0, 128
        %v278 = vpop.trf.xlu0
        %v279 = vpop.trf.xlu0
        %v280 = vpop.trf.xlu0
        %v281 = vpop.trf.xlu0
        %v282 = vpop.trf.xlu0
        %v283 = vpop.trf.xlu0
        %v284 = vpop.trf.xlu0
        %v285 = vpop.trf.xlu0
        %v286 = vpop.trf.xlu0
        %v287 = vpop.trf.xlu0
        %v288 = vpop.trf.xlu0
        %v289 = vpop.trf.xlu0
        %v290 = vpop.trf.xlu0
        %v291 = vpop.trf.xlu0
        %v292 = vpop.trf.xlu0
        %v293 = vpop.trf.xlu0
        %vm294 = vcmask 64512
        %v296 = vsel %vm294, %v254, 0
        %v299 = vsel %vm294, %v256, 0
        %v302 = vsel %vm294, %v258, 0
        %v305 = vsel %vm294, %v260, 0
        %v308 = vsel %vm294, %v262, 0
        %v311 = vsel %vm294, %v264, 0
        %v314 = vsel %vm294, %v266, 0
        %v317 = vsel %vm294, %v268, 0
        %v320 = vsel %vm294, %v255, 0
        %v323 = vsel %vm294, %v257, 0
        %v326 = vsel %vm294, %v259, 0
        %v329 = vsel %vm294, %v261, 0
        %v332 = vsel %vm294, %v263, 0
        %v335 = vsel %vm294, %v265, 0
        %v338 = vsel %vm294, %v267, 0
        %v341 = vsel %vm294, %v269, 0
        %v344 = vsel %vm294, %v278, 0
        %v347 = vsel %vm294, %v280, 0
        %v350 = vsel %vm294, %v282, 0
        %v353 = vsel %vm294, %v284, 0
        %v356 = vsel %vm294, %v286, 0
        %v359 = vsel %vm294, %v288, 0
        %v362 = vsel %vm294, %v290, 0
        %v365 = vsel %vm294, %v292, 0
        %v368 = vsel %vm294, %v279, 0
        %v371 = vsel %vm294, %v281, 0
        %v374 = vsel %vm294, %v283, 0
        %v377 = vsel %vm294, %v285, 0
        %v380 = vsel %vm294, %v287, 0
        %v383 = vsel %vm294, %v289, 0
        %v386 = vsel %vm294, %v291, 0
        %v389 = vsel %vm294, %v293, 0
        %vm391 = vcmask 1043456
        %v393 = vsel %vm391, %v227, 0
        %395 = vmatpush.bf16.msra.mxu0 0
        %396 = vmatpush.bf16.msra.mxu0 0
        %397 = vmatpush.bf16.msra.mxu0 0
        %398 = vmatpush.bf16.msra.mxu0 0
        %399 = vmatpush.bf16.msra.mxu0 0
        %400 = vmatpush.bf16.msra.mxu0 0
        %401 = vmatpush.bf16.msra.mxu0 0
        %402 = vmatpush.bf16.msra.mxu0 %v393
        %403 = vmatmul.bf16.gmra.mxu0 %v296
        %v404 = vpop.f32.mrf.mxu0
        %v405 = vadd.f32 %v230, %v404
        %v406 = vpop.f32.mrf.mxu0
        %v407 = vadd.f32 %v230, %v406
        %408 = vmatmul.bf16.gmra.mxu0 %v299
        %v409 = vpop.f32.mrf.mxu0
        %v410 = vadd.f32 %v230, %v409
        %v411 = vpop.f32.mrf.mxu0
        %v412 = vadd.f32 %v230, %v411
        %413 = vmatmul.bf16.gmra.mxu0 %v302
        %v414 = vpop.f32.mrf.mxu0
        %v415 = vadd.f32 %v230, %v414
        %v416 = vpop.f32.mrf.mxu0
        %v417 = vadd.f32 %v230, %v416
        %418 = vmatmul.bf16.gmra.mxu0 %v305
        %v419 = vpop.f32.mrf.mxu0
        %v420 = vadd.f32 %v230, %v419
        %v421 = vpop.f32.mrf.mxu0
        %v422 = vadd.f32 %v230, %v421
        %423 = vmatmul.bf16.gmra.mxu0 %v308
        %v424 = vpop.f32.mrf.mxu0
        %v425 = vadd.f32 %v230, %v424
        %v426 = vpop.f32.mrf.mxu0
        %v427 = vadd.f32 %v230, %v426
        %428 = vmatmul.bf16.gmra.mxu0 %v311
        %v429 = vpop.f32.mrf.mxu0
        %v430 = vadd.f32 %v230, %v429
        %v431 = vpop.f32.mrf.mxu0
        %v432 = vadd.f32 %v230, %v431
        %433 = vmatmul.bf16.gmra.mxu0 %v314
        %v434 = vpop.f32.mrf.mxu0
        %v435 = vadd.f32 %v230, %v434
        %v436 = vpop.f32.mrf.mxu0
        %v437 = vadd.f32 %v230, %v436
        %438 = vmatmul.bf16.gmra.mxu0 %v317
        %v439 = vpop.f32.mrf.mxu0
        %v440 = vadd.f32 %v230, %v439
        %v441 = vpop.f32.mrf.mxu0
        %v442 = vadd.f32 %v230, %v441
        %443 = vmatmul.bf16.gmra.mxu0 %v320
        %v444 = vpop.f32.mrf.mxu0
        %v445 = vadd.f32 %v230, %v444
        %v446 = vpop.f32.mrf.mxu0
        %v447 = vadd.f32 %v230, %v446
        %448 = vmatmul.bf16.gmra.mxu0 %v323
        %v449 = vpop.f32.mrf.mxu0
        %v450 = vadd.f32 %v230, %v449
        %v451 = vpop.f32.mrf.mxu0
        %v452 = vadd.f32 %v230, %v451
        %453 = vmatmul.bf16.gmra.mxu0 %v326
        %v454 = vpop.f32.mrf.mxu0
        %v455 = vadd.f32 %v230, %v454
        %v456 = vpop.f32.mrf.mxu0
        %v457 = vadd.f32 %v230, %v456
        %458 = vmatmul.bf16.gmra.mxu0 %v329
        %v459 = vpop.f32.mrf.mxu0
        %v460 = vadd.f32 %v230, %v459
        %v461 = vpop.f32.mrf.mxu0
        %v462 = vadd.f32 %v230, %v461
        %463 = vmatmul.bf16.gmra.mxu0 %v332
        %v464 = vpop.f32.mrf.mxu0
        %v465 = vadd.f32 %v230, %v464
        %v466 = vpop.f32.mrf.mxu0
        %v467 = vadd.f32 %v230, %v466
        %468 = vmatmul.bf16.gmra.mxu0 %v335
        %v469 = vpop.f32.mrf.mxu0
        %v470 = vadd.f32 %v230, %v469
        %v471 = vpop.f32.mrf.mxu0
        %v472 = vadd.f32 %v230, %v471
        %473 = vmatmul.bf16.gmra.mxu0 %v338
        %v474 = vpop.f32.mrf.mxu0
        %v475 = vadd.f32 %v230, %v474
        %v476 = vpop.f32.mrf.mxu0
        %v477 = vadd.f32 %v230, %v476
        %478 = vmatmul.bf16.gmra.mxu0 %v341
        %v479 = vpop.f32.mrf.mxu0
        %v480 = vadd.f32 %v230, %v479
        %v481 = vpop.f32.mrf.mxu0
        %v482 = vadd.f32 %v230, %v481
        %483 = vmatmul.bf16.gmra.mxu0 %v344
        %v484 = vpop.f32.mrf.mxu0
        %v485 = vadd.f32 %v230, %v484
        %v486 = vpop.f32.mrf.mxu0
        %v487 = vadd.f32 %v230, %v486
        %488 = vmatmul.bf16.gmra.mxu0 %v347
        %v489 = vpop.f32.mrf.mxu0
        %v490 = vadd.f32 %v230, %v489
        %v491 = vpop.f32.mrf.mxu0
        %v492 = vadd.f32 %v230, %v491
        %493 = vmatmul.bf16.gmra.mxu0 %v350
        %v494 = vpop.f32.mrf.mxu0
        %v495 = vadd.f32 %v230, %v494
        %v496 = vpop.f32.mrf.mxu0
        %v497 = vadd.f32 %v230, %v496
        %498 = vmatmul.bf16.gmra.mxu0 %v353
        %v499 = vpop.f32.mrf.mxu0
        %v500 = vadd.f32 %v230, %v499
        %v501 = vpop.f32.mrf.mxu0
        %v502 = vadd.f32 %v230, %v501
        %503 = vmatmul.bf16.gmra.mxu0 %v356
        %v504 = vpop.f32.mrf.mxu0
        %v505 = vadd.f32 %v230, %v504
        %v506 = vpop.f32.mrf.mxu0
        %v507 = vadd.f32 %v230, %v506
        %508 = vmatmul.bf16.gmra.mxu0 %v359
        %v509 = vpop.f32.mrf.mxu0
        %v510 = vadd.f32 %v230, %v509
        %v511 = vpop.f32.mrf.mxu0
        %v512 = vadd.f32 %v230, %v511
        %513 = vmatmul.bf16.gmra.mxu0 %v362
        %v514 = vpop.f32.mrf.mxu0
        %v515 = vadd.f32 %v230, %v514
        %v516 = vpop.f32.mrf.mxu0
        %v517 = vadd.f32 %v230, %v516
        %518 = vmatmul.bf16.gmra.mxu0 %v365
        %v519 = vpop.f32.mrf.mxu0
        %v520 = vadd.f32 %v230, %v519
        %v521 = vpop.f32.mrf.mxu0
        %v522 = vadd.f32 %v230, %v521
        %523 = vmatmul.bf16.gmra.mxu0 %v368
        %v524 = vpop.f32.mrf.mxu0
        %v525 = vadd.f32 %v230, %v524
        %v526 = vpop.f32.mrf.mxu0
        %v527 = vadd.f32 %v230, %v526
        %528 = vmatmul.bf16.gmra.mxu0 %v371
        %v529 = vpop.f32.mrf.mxu0
        %v530 = vadd.f32 %v230, %v529
        %v531 = vpop.f32.mrf.mxu0
        %v532 = vadd.f32 %v230, %v531
        %533 = vmatmul.bf16.gmra.mxu0 %v374
        %v534 = vpop.f32.mrf.mxu0
        %v535 = vadd.f32 %v230, %v534
        %v536 = vpop.f32.mrf.mxu0
        %v537 = vadd.f32 %v230, %v536
        %538 = vmatmul.bf16.gmra.mxu0 %v377
        %v539 = vpop.f32.mrf.mxu0
        %v540 = vadd.f32 %v230, %v539
        %v541 = vpop.f32.mrf.mxu0
        %v542 = vadd.f32 %v230, %v541
        %543 = vmatmul.bf16.gmra.mxu0 %v380
        %v544 = vpop.f32.mrf.mxu0
        %v545 = vadd.f32 %v230, %v544
        %v546 = vpop.f32.mrf.mxu0
        %v547 = vadd.f32 %v230, %v546
        %548 = vmatmul.bf16.gmra.mxu0 %v383
        %v549 = vpop.f32.mrf.mxu0
        %v550 = vadd.f32 %v230, %v549
        %v551 = vpop.f32.mrf.mxu0
        %v552 = vadd.f32 %v230, %v551
        %553 = vmatmul.bf16.gmra.mxu0 %v386
        %v554 = vpop.f32.mrf.mxu0
        %v555 = vadd.f32 %v230, %v554
        %v556 = vpop.f32.mrf.mxu0
        %v557 = vadd.f32 %v230, %v556
        %558 = vmatmul.bf16.gmra.mxu0 %v389
        %v559 = vpop.f32.mrf.mxu0
        %v560 = vadd.f32 %v230, %v559
        %v561 = vpop.f32.mrf.mxu0
        %v562 = vadd.f32 %v230, %v561
        %563 = vdwg.mxu0
        %v564 = vmax.f32 %v405, 0.0
        %v565 = vmax.f32 %v407, 0.0
        %v566 = vmax.f32 %v410, 0.0
        %v567 = vmax.f32 %v412, 0.0
        %v568 = vmax.f32 %v415, 0.0
        %v569 = vmax.f32 %v417, 0.0
        %v570 = vmax.f32 %v420, 0.0
        %v571 = vmax.f32 %v422, 0.0
        %v572 = vmax.f32 %v425, 0.0
        %v573 = vmax.f32 %v427, 0.0
        %v574 = vmax.f32 %v430, 0.0
        %v575 = vmax.f32 %v432, 0.0
        %v576 = vmax.f32 %v435, 0.0
        %v577 = vmax.f32 %v437, 0.0
        %v578 = vmax.f32 %v440, 0.0
        %v579 = vmax.f32 %v442, 0.0
        %v580 = vmax.f32 %v445, 0.0
        %v581 = vmax.f32 %v447, 0.0
        %v582 = vmax.f32 %v450, 0.0
        %v583 = vmax.f32 %v452, 0.0
        %v584 = vmax.f32 %v455, 0.0
        %v585 = vmax.f32 %v457, 0.0
        %v586 = vmax.f32 %v460, 0.0
        %v587 = vmax.f32 %v462, 0.0
        %v588 = vmax.f32 %v465, 0.0
        %v589 = vmax.f32 %v467, 0.0
        %v590 = vmax.f32 %v470, 0.0
        %v591 = vmax.f32 %v472, 0.0
        %v592 = vmax.f32 %v475, 0.0
        %v593 = vmax.f32 %v477, 0.0
        %v594 = vmax.f32 %v480, 0.0
        %v595 = vmax.f32 %v482, 0.0
        %v596 = vmax.f32 %v485, 0.0
        %v597 = vmax.f32 %v487, 0.0
        %v598 = vmax.f32 %v490, 0.0
        %v599 = vmax.f32 %v492, 0.0
        %v600 = vmax.f32 %v495, 0.0
        %v601 = vmax.f32 %v497, 0.0
        %v602 = vmax.f32 %v500, 0.0
        %v603 = vmax.f32 %v502, 0.0
        %v604 = vmax.f32 %v505, 0.0
        %v605 = vmax.f32 %v507, 0.0
        %v606 = vmax.f32 %v510, 0.0
        %v607 = vmax.f32 %v512, 0.0
        %v608 = vmax.f32 %v515, 0.0
        %v609 = vmax.f32 %v517, 0.0
        %v610 = vmax.f32 %v520, 0.0
        %v611 = vmax.f32 %v522, 0.0
        %v612 = vmax.f32 %v525, 0.0
        %v613 = vmax.f32 %v527, 0.0
        %v614 = vmax.f32 %v530, 0.0
        %v615 = vmax.f32 %v532, 0.0
        %v616 = vmax.f32 %v535, 0.0
        %v617 = vmax.f32 %v537, 0.0
        %v618 = vmax.f32 %v540, 0.0
        %v619 = vmax.f32 %v542, 0.0
        %v620 = vmax.f32 %v545, 0.0
        %v621 = vmax.f32 %v547, 0.0
        %v622 = vmax.f32 %v550, 0.0
        %v623 = vmax.f32 %v552, 0.0
        %v624 = vmax.f32 %v555, 0.0
        %v625 = vmax.f32 %v557, 0.0
        %v626 = vmax.f32 %v560, 0.0
        %v627 = vmax.f32 %v562, 0.0
        %v628 = vpack.c.bf16 %v564, %v564
        %v629 = vpack.c.bf16 %v565, %v565
        %v630 = vpack.c.bf16 %v566, %v566
        %v631 = vpack.c.bf16 %v567, %v567
        %v632 = vpack.c.bf16 %v568, %v568
        %v633 = vpack.c.bf16 %v569, %v569
        %v634 = vpack.c.bf16 %v570, %v570
        %v635 = vpack.c.bf16 %v571, %v571
        %v636 = vpack.c.bf16 %v572, %v572
        %v637 = vpack.c.bf16 %v573, %v573
        %v638 = vpack.c.bf16 %v574, %v574
        %v639 = vpack.c.bf16 %v575, %v575
        %v640 = vpack.c.bf16 %v576, %v576
        %v641 = vpack.c.bf16 %v577, %v577
        %v642 = vpack.c.bf16 %v578, %v578
        %v643 = vpack.c.bf16 %v579, %v579
        %v644 = vpack.c.bf16 %v580, %v580
        %v645 = vpack.c.bf16 %v581, %v581
        %v646 = vpack.c.bf16 %v582, %v582
        %v647 = vpack.c.bf16 %v583, %v583
        %v648 = vpack.c.bf16 %v584, %v584
        %v649 = vpack.c.bf16 %v585, %v585
        %v650 = vpack.c.bf16 %v586, %v586
        %v651 = vpack.c.bf16 %v587, %v587
        %v652 = vpack.c.bf16 %v588, %v588
        %v653 = vpack.c.bf16 %v589, %v589
        %v654 = vpack.c.bf16 %v590, %v590
        %v655 = vpack.c.bf16 %v591, %v591
        %v656 = vpack.c.bf16 %v592, %v592
        %v657 = vpack.c.bf16 %v593, %v593
        %v658 = vpack.c.bf16 %v594, %v594
        %v659 = vpack.c.bf16 %v595, %v595
        %v660 = vpack.c.bf16 %v596, %v596
        %v661 = vpack.c.bf16 %v597, %v597
        %v662 = vpack.c.bf16 %v598, %v598
        %v663 = vpack.c.bf16 %v599, %v599
        %v664 = vpack.c.bf16 %v600, %v600
        %v665 = vpack.c.bf16 %v601, %v601
        %v666 = vpack.c.bf16 %v602, %v602
        %v667 = vpack.c.bf16 %v603, %v603
        %v668 = vpack.c.bf16 %v604, %v604
        %v669 = vpack.c.bf16 %v605, %v605
        %v670 = vpack.c.bf16 %v606, %v606
        %v671 = vpack.c.bf16 %v607, %v607
        %v672 = vpack.c.bf16 %v608, %v608
        %v673 = vpack.c.bf16 %v609, %v609
        %v674 = vpack.c.bf16 %v610, %v610
        %v675 = vpack.c.bf16 %v611, %v611
        %v676 = vpack.c.bf16 %v612, %v612
        %v677 = vpack.c.bf16 %v613, %v613
        %v678 = vpack.c.bf16 %v614, %v614
        %v679 = vpack.c.bf16 %v615, %v615
        %v680 = vpack.c.bf16 %v616, %v616
        %v681 = vpack.c.bf16 %v617, %v617
        %v682 = vpack.c.bf16 %v618, %v618
        %v683 = vpack.c.bf16 %v619, %v619
        %v684 = vpack.c.bf16 %v620, %v620
        %v685 = vpack.c.bf16 %v621, %v621
        %v686 = vpack.c.bf16 %v622, %v622
        %v687 = vpack.c.bf16 %v623, %v623
        %v688 = vpack.c.bf16 %v624, %v624
        %v689 = vpack.c.bf16 %v625, %v625
        %v690 = vpack.c.bf16 %v626, %v626
        %v691 = vpack.c.bf16 %v627, %v627
        %692 = vst [vmem:[%s221] sm:$0xf] %v628
        %693 = vst [vmem:[%s221 + $0x4] sm:$0xf] %v629
        %694 = vst [vmem:[%s221 + $0x8] sm:$0xf] %v630
        %695 = vst [vmem:[%s221 + $0xc] sm:$0xf] %v631
        %696 = vst [vmem:[%s221 + $0x10] sm:$0xf] %v632
        %697 = vst [vmem:[%s221 + $0x14] sm:$0xf] %v633
        %698 = vst [vmem:[%s221 + $0x18] sm:$0xf] %v634
        %699 = vst [vmem:[%s221 + $0x1c] sm:$0xf] %v635
        %700 = vst [vmem:[%s221 + $0x20] sm:$0xf] %v636
        %701 = vst [vmem:[%s221 + $0x24] sm:$0xf] %v637
        %702 = vst [vmem:[%s221 + $0x28] sm:$0xf] %v638
        %703 = vst [vmem:[%s221 + $0x2c] sm:$0xf] %v639
        %704 = vst [vmem:[%s221 + $0x30] sm:$0xf] %v640
        %705 = vst [vmem:[%s221 + $0x34] sm:$0xf] %v641
        %706 = vst [vmem:[%s221 + $0x38] sm:$0xf] %v642
        %707 = vst [vmem:[%s221 + $0x3c] sm:$0xf] %v643
        %708 = vst [vmem:[%s221 + $0x40] sm:$0xf] %v644
        %709 = vst [vmem:[%s221 + $0x44] sm:$0xf] %v645
        %710 = vst [vmem:[%s221 + $0x48] sm:$0xf] %v646
        %711 = vst [vmem:[%s221 + $0x4c] sm:$0xf] %v647
        %712 = vst [vmem:[%s221 + $0x50] sm:$0xf] %v648
        %713 = vst [vmem:[%s221 + $0x54] sm:$0xf] %v649
        %714 = vst [vmem:[%s221 + $0x58] sm:$0xf] %v650
        %715 = vst [vmem:[%s221 + $0x5c] sm:$0xf] %v651
        %716 = vst [vmem:[%s221 + $0x60] sm:$0xf] %v652
        %717 = vst [vmem:[%s221 + $0x64] sm:$0xf] %v653
        %718 = vst [vmem:[%s221 + $0x68] sm:$0xf] %v654
        %719 = vst [vmem:[%s221 + $0x6c] sm:$0xf] %v655
        %720 = vst [vmem:[%s221 + $0x70] sm:$0xf] %v656
        %721 = vst [vmem:[%s221 + $0x74] sm:$0xf] %v657
        %722 = vst [vmem:[%s221 + $0x78] sm:$0xf] %v658
        %723 = vst [vmem:[%s221 + $0x7c] sm:$0xf] %v659
        %724 = vst [vmem:[%s221 + $0x80] sm:$0xf] %v660
        %725 = vst [vmem:[%s221 + $0x84] sm:$0xf] %v661
        %726 = vst [vmem:[%s221 + $0x88] sm:$0xf] %v662
        %727 = vst [vmem:[%s221 + $0x8c] sm:$0xf] %v663
        %728 = vst [vmem:[%s221 + $0x90] sm:$0xf] %v664
        %729 = vst [vmem:[%s221 + $0x94] sm:$0xf] %v665
        %730 = vst [vmem:[%s221 + $0x98] sm:$0xf] %v666
        %731 = vst [vmem:[%s221 + $0x9c] sm:$0xf] %v667
        %732 = vst [vmem:[%s221 + $0xa0] sm:$0xf] %v668
        %733 = vst [vmem:[%s221 + $0xa4] sm:$0xf] %v669
        %734 = vst [vmem:[%s221 + $0xa8] sm:$0xf] %v670
        %735 = vst [vmem:[%s221 + $0xac] sm:$0xf] %v671
        %736 = vst [vmem:[%s221 + $0xb0] sm:$0xf] %v672
        %737 = vst [vmem:[%s221 + $0xb4] sm:$0xf] %v673
        %738 = vst [vmem:[%s221 + $0xb8] sm:$0xf] %v674
        %739 = vst [vmem:[%s221 + $0xbc] sm:$0xf] %v675
        %740 = vst [vmem:[%s221 + $0xc0] sm:$0xf] %v676
        %741 = vst [vmem:[%s221 + $0xc4] sm:$0xf] %v677
        %742 = vst [vmem:[%s221 + $0xc8] sm:$0xf] %v678
        %743 = vst [vmem:[%s221 + $0xcc] sm:$0xf] %v679
        %744 = vst [vmem:[%s221 + $0xd0] sm:$0xf] %v680
        %745 = vst [vmem:[%s221 + $0xd4] sm:$0xf] %v681
        %746 = vst [vmem:[%s221 + $0xd8] sm:$0xf] %v682
        %747 = vst [vmem:[%s221 + $0xdc] sm:$0xf] %v683
        %748 = vst [vmem:[%s221 + $0xe0] sm:$0xf] %v684
        %749 = vst [vmem:[%s221 + $0xe4] sm:$0xf] %v685
        %750 = vst [vmem:[%s221 + $0xe8] sm:$0xf] %v686
        %751 = vst [vmem:[%s221 + $0xec] sm:$0xf] %v687
        %752 = vst [vmem:[%s221 + $0xf0] sm:$0xf] %v688
        %753 = vst [vmem:[%s221 + $0xf4] sm:$0xf] %v689
        %754 = vst [vmem:[%s221 + $0xf8] sm:$0xf] %v690
        %755 = vst [vmem:[%s221 + $0xfc] sm:$0xf] %v691
        %s756 = sand.u32 %s113, 1
        %s757 = scalar_lea.sflag [#allocation4], %s756
        %s758 = sand.u32 %s113, 1
        %s759 = smul.addr %s758, 256
        %s760 = scalar_lea.vmem [#allocation7], %s759
        // Predicated region
        $region41: #{tpu_custom_call.1} parent=31 // pred_check
          %p761 = pneg %p123
        $region42: #{tpu_custom_call.1} parent=31 // pred_check_branch
          %763 = sbr.rel (%p761) target = $region44
        $region43: #{tpu_custom_call.1} parent=31 // pred_region
          %s764 = smul.u32 64, %s26
          %766 = vsyncadd %s757, 0
          %s767 = smul.addr %s25, 64
          %s768 = sadd.s32 %s764, %s767
          %s769 = smul.addr %s768, 4
          %s770 = scalar_lea.hbm %s3, %s769
          %s771 = sshll.u32 %s760, 4
          %s772 = int_to_ptr.vmem [resolvable:$true] %s771
          %s773 = sshll.u32 %s770, 4
          %s774 = int_to_ptr.hbm [resolvable:$true] %s773
          %779 = dma.vmem_to_hbm [thread:$0]  %s772, 4096, %s774, %s757, 64, 64, 4
        $region44: #{tpu_custom_call.1} parent=31 // pred_fallthru
          _
      $region32: #{tpu_custom_call.1} parent=5 // pred_fallthru
        _
      %p780 = scmp.le.s32.totalorder 2, %s16
      // Predicated region
      $region45: #{tpu_custom_call.1} parent=5 // pred_check
        %p781 = pneg %p780
      $region46: #{tpu_custom_call.1} parent=5 // pred_check_branch
        %783 = sbr.rel (%p781) target = $region48
      $region47: #{tpu_custom_call.1} parent=5 // pred_region
        %s784 = ssub.s32 %s16, 2
        // Predicated region
        $region49: #{tpu_custom_call.1} parent=47 // pred_check
          %p785 = pneg %p129
        $region50: #{tpu_custom_call.1} parent=47 // pred_check_branch
          %787 = sbr.rel (%p785) target = $region52
        $region51: #{tpu_custom_call.1} parent=47 // pred_region
          %s788 = sand.u32 %s114, 1
          %s789 = scalar_lea.sflag [#allocation4], %s788
          %s790 = sand.u32 %s114, 1
          %s791 = smul.addr %s790, 256
          %s792 = scalar_lea.vmem [#allocation7], %s791
          %794 = dma.done %s789, 4096
        $region52: #{tpu_custom_call.1} parent=47 // pred_fallthru
          _
      $region48: #{tpu_custom_call.1} parent=5 // pred_fallthru
        _
    $region6: #{tpu_custom_call.1} parent=1 // loop_footer
      %s20 = sadd.s32 1, %s16
    $region7: #{tpu_custom_call.1} parent=1 // loop_footer_branch
      %15 = sbr.rel target = $region3
    $region8: #{tpu_custom_call.1} parent=1 // loop_exit
      _
    %795 = vsyncpa [#allocation3], 1
    %s796 = scalar_lea.sflag [#allocation3], 1
    %797 = vsyncpa %s796, 1
    %798 = vsyncpa [#allocation6], 1
    %799 = vsyncpa [#allocation4], 1
    %s800 = scalar_lea.sflag [#allocation4], 1
    %801 = vsyncpa %s800, 1

</llo_original>
